<compile_context>
chip_gen: v7x
topology: tpu7x:2x2x1
jax: 0.10.0
libtpu: 0.0.40
codegen_flags: <defaults>
</compile_context>

<pallas_src>
import functools

import jax
import jax.numpy as jnp
from jax import lax
from jax.experimental import pallas as pl
from jax.experimental.pallas import tpu as pltpu


def _round_up(n: int, m: int) -> int:
    return ((n + m - 1) // m) * m


def _cdiv(a: int, b: int) -> int:
    return (a + b - 1) // b


def _vmem_capacity_bytes() -> int:
    """Generation-aware VMEM capacity (128 MiB on v5e/v6e, 64 MiB/TC on v7x)."""
    try:
        info = pltpu.get_tpu_info()
        return int(getattr(info, "vmem_capacity_bytes", 64 << 20))
    except Exception:
        return 64 << 20   # v7x per-TensorCore floor: always a safe budget


def _linreg_kernel(x_ref, w_ref, b_ref, o_ref, acc_ref, *,
                   apply_sigmoid: bool, block_k: int, k_rem: int, multi_k: bool):
    # x_ref  : (bm, tk)    VMEM tile of the streamed input (batch along sublanes)
    # w_ref  : (1, d_pad)  full weight row, VMEM-resident across the whole grid
    # b_ref  : (1, 1)      SMEM scalar bias
    # o_ref  : (bm, 1)     output block
    # acc_ref: (bm, 1)     f32 VMEM accumulator (persists across the K grid axis)
    k = pl.program_id(1)
    nk = pl.num_programs(1)

    @pl.when(k == 0)
    def _init():
        acc_ref[...] = jnp.zeros_like(acc_ref)

    if multi_k:
        start = pl.multiple_of(k * block_k, 128)
        w = w_ref[:, pl.ds(start, block_k)]        # (1, tk) slice of the resident row
    else:
        w = w_ref[...]                             # single K block == full feature dim

    def _accum(xv):
        # x(bm, tk) contracted with w(1, tk) over the last dim of both -> (bm, 1).
        # The RHS (weight row) is the MXU stationary operand; the big x tile streams
        # through the array, so the kernel stays HBM-bound.
        acc_ref[...] += lax.dot_general(
            xv, w,
            dimension_numbers=(((1,), (1,)), ((), ())),
            preferred_element_type=jnp.float32,
            precision=lax.Precision.HIGHEST,       # fp32 contract (Mosaic: DEFAULT|HIGHEST only)
        )

    if k_rem:
        # The last K block extends past input_dim: zero the invalid tail lanes (stale VMEM
        # can hold NaN/Inf and NaN*0 would contaminate every row of the accumulator).
        # Only the final K step pays for the mask.
        @pl.when(k < nk - 1)
        def _body_full():
            _accum(x_ref[...])

        @pl.when(k == nk - 1)
        def _body_tail():
            col = lax.broadcasted_iota(jnp.int32, x_ref.shape, 1)
            _accum(jnp.where(col < k_rem, x_ref[...], 0.0))
    else:
        _accum(x_ref[...])

    @pl.when(k == nk - 1)
    def _finalize():
        y = acc_ref[...] + b_ref[0, 0]
        if apply_sigmoid:
            y = jax.nn.sigmoid(y)
        o_ref[...] = y.astype(o_ref.dtype)


@functools.partial(jax.jit, static_argnums=(3, 4, 5))
def _forward_jit(x, weight, bias, model_type, bm, tk):
    x = jnp.asarray(x, jnp.float32)
    weight = jnp.asarray(weight, jnp.float32).reshape(1, -1)
    bias = jnp.asarray(bias, jnp.float32).reshape(1, 1)
    B, D = x.shape
    assert weight.shape[1] == D

    # ---- feature (K) tiling --------------------------------------------------
    tk = _round_up(max(128, min(int(tk), 8192)), 128)
    if D <= tk:
        tk_eff, nk, k_rem, d_pad = D, 1, 0, D      # single K block == full feature dim
    else:
        tk_eff = tk                                # lane-aligned K blocks
        nk = _cdiv(D, tk_eff)
        k_rem = D - (nk - 1) * tk_eff
        k_rem = 0 if k_rem == tk_eff else k_rem
        d_pad = nk * tk_eff

    # ---- batch tiling --------------------------------------------------------
    vmem_cap = _vmem_capacity_bytes()
    max_x_tile_bytes = max(16 << 20, int(vmem_cap * 0.55))   # 2x-buffered x-tile budget
    if B <= 128:
        # Single tile.  With the (bm, 1) output orientation batch sits on sublanes, so
        # 8-row granularity is already aligned (the old lane-dense concern no longer applies).
        bm_eff = _round_up(max(B, 1), 8)
    else:
        bm_req = _round_up(max(128, int(bm)), 128)
        half_b = max(128, _round_up(_cdiv(B, 2), 8))          # >= 2 tiles -> both v7x TCs busy
        bm_eff = min(bm_req, half_b)
        while bm_eff > 128 and 2 * bm_eff * tk_eff * 4 > max_x_tile_bytes:
            bm_eff = _round_up(bm_eff // 2, 8)
    nb = _cdiv(B, bm_eff)

    # ---- only the tiny weight row is padded (x tail is masked in-kernel) ----
    if d_pad != D:
        weight = jnp.pad(weight, ((0, 0), (0, d_pad - D)))

    needed = (2 * bm_eff * tk_eff * 4      # double-buffered streamed x tile
              + 2 * d_pad * 4              # resident weight row
              + 2 * bm_eff * 4             # output block
              + bm_eff * 4)                # f32 accumulator scratch
    vmem_limit = int(min(max(needed + (4 << 20), 32 << 20), vmem_cap))

    apply_sigmoid = (model_type == "classification")
    kernel = functools.partial(
        _linreg_kernel, apply_sigmoid=apply_sigmoid,
        block_k=tk_eff, k_rem=k_rem, multi_k=(nk > 1))

    return pl.pallas_call(
        kernel,
        out_shape=jax.ShapeDtypeStruct((B, 1), jnp.float32),
        grid=(nb, nk),
        in_specs=[
            pl.BlockSpec((bm_eff, tk_eff), lambda i, k: (i, k)),   # streamed x tile
            pl.BlockSpec((1, d_pad), lambda i, k: (0, 0)),         # weight row, hoisted once
            pl.BlockSpec(memory_space=pltpu.SMEM),                 # bias scalar
        ],
        out_specs=pl.BlockSpec((bm_eff, 1), lambda i, k: (i, 0)),
        scratch_shapes=[pltpu.VMEM((bm_eff, 1), jnp.float32)],
        compiler_params=pltpu.CompilerParams(
            dimension_semantics=("parallel", "arbitrary"),
            vmem_limit_bytes=vmem_limit,
        ),
        cost_estimate=pl.CostEstimate(
            flops=2 * B * D,
            transcendentals=B if apply_sigmoid else 0,
            bytes_accessed=4 * (B * D + d_pad + B + 1),
        ),
    )(x, weight, bias)


def linear_regression_forward(x, weight, bias, model_type: str = "regression",
                              bm: int = 1024, tk: int = 2048):
    """Forward pass of LinearRegression.

    Args:
      x:      (batch, input_dim)
      weight: (1, input_dim)  (torch.nn.Linear layout; (input_dim,) also accepted)
      bias:   (1,) or scalar
      model_type: "regression" (identity) or "classification" (sigmoid)
      bm:     requested batch tile (clamped for megacore balance and VMEM budget)
      tk:     requested feature tile (used only when input_dim > tk)
    Returns:
      (batch, 1) float32
    """
    return _forward_jit(x, weight, bias, model_type, int(bm), int(tk))


if __name__ == "__main__":
    key = jax.random.PRNGKey(0)
    kx, kw, kb, kx2 = jax.random.split(key, 4)

    # Small shapes consistent with the module: (batch, input_dim) -> (batch, 1).
    batch, input_dim = 8, 32
    x = jax.random.normal(kx, (batch, input_dim), dtype=jnp.float32)
    bound = 1.0 / (input_dim ** 0.5)   # torch.nn.Linear uniform(-1/sqrt(D), 1/sqrt(D)) init
    weight = jax.random.uniform(kw, (1, input_dim), minval=-bound, maxval=bound,
                                dtype=jnp.float32)
    bias = jax.random.uniform(kb, (1,), minval=-bound, maxval=bound, dtype=jnp.float32)

    # Regression path (Identity final activation -- module default).
    y = jax.block_until_ready(linear_regression_forward(x, weight, bias, "regression"))
    y_ref = jnp.dot(x, weight.T, precision=lax.Precision.HIGHEST) + bias[0]
    assert y.shape == (batch, 1)
    assert jnp.allclose(y, y_ref, atol=1e-5, rtol=1e-5)

    # Classification path (Sigmoid).
    y_cls = jax.block_until_ready(
        linear_regression_forward(x, weight, bias, "classification"))
    assert jnp.allclose(y_cls, jax.nn.sigmoid(y_ref), atol=1e-5, rtol=1e-5)

    # Ragged multi-tile path: non-aligned batch and feature dims exercise the cdiv grid
    # (no x padding), the in-kernel K-tail mask, >= 2 parallel batch tiles and the
    # K-axis accumulator.
    b2, d2 = 272, 200
    x2 = jax.random.normal(kx2, (b2, d2), dtype=jnp.float32)
    bound2 = 1.0 / (d2 ** 0.5)
    w2 = jax.random.uniform(kw, (1, d2), minval=-bound2, maxval=bound2, dtype=jnp.float32)
    bias2 = jax.random.uniform(kb, (1,), minval=-bound2, maxval=bound2, dtype=jnp.float32)
    y2 = jax.block_until_ready(
        linear_regression_forward(x2, w2, bias2, "regression", bm=128, tk=128))
    y2_ref = jnp.dot(x2, w2.T, precision=lax.Precision.HIGHEST) + bias2[0]
    assert y2.shape == (b2, 1)
    assert jnp.allclose(y2, y2_ref, atol=1e-4, rtol=1e-4)

    print("KERNEL_OK")
</pallas_src>

<mosaic_0001>
module attributes {stable_mosaic.version = 11 : i64} {
  func.func @_linreg_kernel(%arg0: i32, %arg1: i32, %arg2: memref<8x32xf32, #tpu.memory_space<vmem>>, %arg3: memref<1x32xf32, #tpu.memory_space<vmem>>, %arg4: memref<1x1xf32, #tpu.memory_space<smem>>, %arg5: memref<8x1xf32, #tpu.memory_space<vmem>>, %arg6: memref<8x1xf32, #tpu.memory_space<vmem>>) attributes {dimension_semantics = [#tpu.dimension_semantics<parallel>, #tpu.dimension_semantics<arbitrary>], iteration_bounds = array<i64: 1, 1>, scalar_prefetch = 0 : i64, scratch_operands = 1 : i64, tpu.core_type = #tpu.core_type<tc>, window_params = [{transform_indices = @transform_0, window_bounds = array<i64: 8, 32>}, {pipeline_mode = #tpu.pipeline_mode<synchronous>, transform_indices = @transform_1, window_bounds = array<i64: 1, 32>}, {transform_indices = @transform_2, window_bounds = array<i64: 1, 1>}, {transform_indices = @transform_3, window_bounds = array<i64: 8, 1>}]} {
    %c0_i32 = arith.constant 0 : i32
    %0 = arith.cmpi eq, %arg1, %c0_i32 : i32
    %1 = arith.extui %0 : i1 to i32
    %c0_i32_0 = arith.constant 0 : i32
    %2 = arith.cmpi ne, %1, %c0_i32_0 : i32
    scf.if %2 {
      %cst_10 = arith.constant 0.000000e+00 : f32
      %12 = vector.broadcast %cst_10 : f32 to vector<8x1xf32>
      %c0_11 = arith.constant 0 : index
      %c0_12 = arith.constant 0 : index
      %13 = vector.load %arg6[%c0_11, %c0_12] : memref<8x1xf32, #tpu.memory_space<vmem>>, vector<8x1xf32>
      tpu.vector_store %arg6[%c0_11, %c0_12], %12 {strides = array<i32>} : memref<8x1xf32, #tpu.memory_space<vmem>>, vector<8x1xf32>,
    } else {
    }
    %c0 = arith.constant 0 : index
    %c0_1 = arith.constant 0 : index
    %3 = vector.load %arg3[%c0, %c0_1] : memref<1x32xf32, #tpu.memory_space<vmem>>, vector<1x32xf32>
    %c0_2 = arith.constant 0 : index
    %c0_3 = arith.constant 0 : index
    %4 = vector.load %arg2[%c0_2, %c0_3] : memref<8x32xf32, #tpu.memory_space<vmem>>, vector<8x32xf32>
    %c0_4 = arith.constant 0 : index
    %c0_5 = arith.constant 0 : index
    %5 = vector.load %arg6[%c0_4, %c0_5] : memref<8x1xf32, #tpu.memory_space<vmem>>, vector<8x1xf32>
    %cst = arith.constant dense<0.000000e+00> : vector<8x1xf32>
    %6 = tpu.matmul %4, %3, %cst {dimension_numbers = #tpu.dot_dimension_numbers<[1], [1], [0], [0], [0, 0, 1, 0], [], []>, precision = #tpu.contract_precision<fp32>} : vector<8x32xf32>, vector<1x32xf32>, vector<8x1xf32> -> vector<8x1xf32>
    %7 = arith.addf %5, %6 : vector<8x1xf32>
    %c0_6 = arith.constant 0 : index
    %c0_7 = arith.constant 0 : index
    %8 = vector.load %arg6[%c0_6, %c0_7] : memref<8x1xf32, #tpu.memory_space<vmem>>, vector<8x1xf32>
    tpu.vector_store %arg6[%c0_6, %c0_7], %7 {strides = array<i32>} : memref<8x1xf32, #tpu.memory_space<vmem>>, vector<8x1xf32>,
    %c0_i32_8 = arith.constant 0 : i32
    %9 = arith.cmpi eq, %arg1, %c0_i32_8 : i32
    %10 = arith.extui %9 : i1 to i32
    %c0_i32_9 = arith.constant 0 : i32
    %11 = arith.cmpi ne, %10, %c0_i32_9 : i32
    scf.if %11 {
      %c0_10 = arith.constant 0 : index
      %c0_11 = arith.constant 0 : index
      %12 = vector.load %arg6[%c0_10, %c0_11] : memref<8x1xf32, #tpu.memory_space<vmem>>, vector<8x1xf32>
      %c0_12 = arith.constant 0 : index
      %c0_13 = arith.constant 0 : index
      %13 = memref.load %arg4[%c0_12, %c0_13] : memref<1x1xf32, #tpu.memory_space<smem>>
      %14 = vector.broadcast %13 : f32 to vector<8x1xf32>
      %15 = arith.addf %12, %14 : vector<8x1xf32>
      %c0_14 = arith.constant 0 : index
      %c0_15 = arith.constant 0 : index
      %16 = vector.load %arg5[%c0_14, %c0_15] : memref<8x1xf32, #tpu.memory_space<vmem>>, vector<8x1xf32>
      tpu.vector_store %arg5[%c0_14, %c0_15], %15 {strides = array<i32>} : memref<8x1xf32, #tpu.memory_space<vmem>>, vector<8x1xf32>,
    } else {
    }
    return
  }
  func.func @transform_0(%arg0: i32, %arg1: i32) -> (i32, i32) {
    %c0_i32 = arith.constant 0 : i32
    return %arg0, %arg1 : i32, i32
  }
  func.func @transform_1(%arg0: i32, %arg1: i32) -> (i32, i32) {
    %c0_i32 = arith.constant 0 : i32
    %c0_i32_0 = arith.constant 0 : i32
    %c0_i32_1 = arith.constant 0 : i32
    return %c0_i32, %c0_i32_0 : i32, i32
  }
  func.func @transform_2(%arg0: i32, %arg1: i32) -> (i32, i32) {
    %c0_i32 = arith.constant 0 : i32
    %c0_i32_0 = arith.constant 0 : i32
    %c0_i32_1 = arith.constant 0 : i32
    return %c0_i32, %c0_i32_0 : i32, i32
  }
  func.func @transform_3(%arg0: i32, %arg1: i32) -> (i32, i32) {
    %c0_i32 = arith.constant 0 : i32
    %c0_i32_0 = arith.constant 0 : i32
    return %arg0, %c0_i32 : i32, i32
  }
}

</mosaic_0001>

<llo_original>
// kernel: _forward_jit.1
$region0: #{_forward_jit.1}
  #allocation0 [shape = 'u32[]', space=smem, size = 0x4, offset = 0x4, fixed_abs, tag = 'smem constant byte address 0x4 - core index']
  #allocation1 [shape = 'u32[144,128]{1,0:T(1,128)}', space=vmem, size = 0x12000, scoped, tag = 'internal scratch']
  #allocation2 [shape = 'f32[8,1]{1,0:T(8,128)}', space=vmem, size = 0x1000, scoped, tag = 'scratch operand']
  #allocation3 [shape = 'f32[1,1]{1,0:T(1,128)S(6)}', space=smem, size = 0x200, scoped, tag = 'scoped memory for _forward_jit.1']
  %s0 = inlined_call_operand.hbm [shape: f32[8,32], index: 0, kind: input, shape index: {}]
  %s1 = inlined_call_operand.vmem [shape: f32[1,32], index: 1, kind: input, shape index: {}]
  %s2 = inlined_call_operand.<no memory space> [shape: f32[1,1], index: 2, kind: input, shape index: {}]
  %s3 = inlined_call_operand.vmem [shape: f32[8,1], index: 3, kind: output, shape index: {}]
  %s4 = sld [smem:[#allocation0]]
  $region34: #{_forward_jit.1} parent=0
    _
  %s6 = ssub.s32 1, %s4
  %s7 = scalar_select 0, %s6, %s4
  %8 = sst [smem:[#allocation3]] %s2
  $region1: #{_forward_jit.1} parent=0
    #allocation4 [shape = 'u8[4096]{0}', space=vmem, size = 0x1000, scoped, tag = 'input window, operand 0, single buffered']
    #allocation5 [shape = 's32[1]{0}', space=sflag, size = 0x4, scoped, tag = 'scoped memory for _forward_jit.1']
    %9 = vsyncpa [#allocation5], 0
    // Predicated region
    $region2: #{_forward_jit.1} parent=1 // pred_check
      _
    $region3: #{_forward_jit.1} parent=1 // pred_check_branch
      %11 = sbr.rel (0) target = $region5
    $region4: #{_forward_jit.1} parent=1 // pred_region
      %s13 = ssub.s32 128, 128
      %14 = vsyncadd [#allocation5], %s13
      %s16 = sshll.u32 [#allocation4], 4
      %s17 = int_to_ptr.vmem [resolvable:$true] %s16
      %19 = dma.hbm_to_vmem [thread:$0]  %s0, 128, %s17, [#allocation5]
    $region5: #{_forward_jit.1} parent=1 // pred_fallthru
      _
    // Predicated region
    $region6: #{_forward_jit.1} parent=1 // pred_check
      _
    $region7: #{_forward_jit.1} parent=1 // pred_check_branch
      %21 = sbr.rel (0) target = $region9
    $region8: #{_forward_jit.1} parent=1 // pred_region
      _
    $region9: #{_forward_jit.1} parent=1 // pred_fallthru
      _
    // Predicated region
    $region10: #{_forward_jit.1} parent=1 // pred_check
      _
    $region11: #{_forward_jit.1} parent=1 // pred_check_branch
      %23 = sbr.rel (0) target = $region13
    $region12: #{_forward_jit.1} parent=1 // pred_region
      _
    $region13: #{_forward_jit.1} parent=1 // pred_fallthru
      _
    // Predicated region
    $region14: #{_forward_jit.1} parent=1 // pred_check
      _
    $region15: #{_forward_jit.1} parent=1 // pred_check_branch
      %25 = sbr.rel (0) target = $region17
    $region16: #{_forward_jit.1} parent=1 // pred_region
      %26 = dma.done [#allocation5], 128
    $region17: #{_forward_jit.1} parent=1 // pred_fallthru
      _
    %p27 = scmp.eq.s32.totalorder 0, 0
    // Predicated region
    $region18: #{_forward_jit.1} parent=1 // pred_check
      %p28 = pneg %p27
    $region19: #{_forward_jit.1} parent=1 // pred_check_branch
      %30 = sbr.rel (%p28) target = $region21
    $region20: #{_forward_jit.1} parent=1 // pred_region
      %vm31 = vcmask 7168
      %32 = vst.msk [vmem:[#allocation2] sm:$0xff] %vm31, 0.0
    $region21: #{_forward_jit.1} parent=1 // pred_fallthru
      _
    %v33 = vld [vmem:[%s1] sm:$0x1]
    %v34 = vld [vmem:[#allocation4] sm:$0xff]
    %v35 = vld [vmem:[#allocation2] sm:$0xff]
    %v37 = vlaneseq
    %v38 = vshrl.u32 %v37, 7
    %v39 = vsub.s32 0, %v38
    %v40 = vrot.slane %v33, %v39
    %v42 = vmul.f32 %v34, %v40
    %vm43 = vcmask 261120
    %v44 = vsel %vm43, %v42, 0.0
    %45 = vadd.xlane.f32.xlu0 %v44
    %v46 = vpop.xlane.xlu0 %45
    %v47 = vadd.f32 %v35, %v46
    %vm48 = vcmask 7168
    %49 = vst.msk [vmem:[#allocation2] sm:$0xff] %vm48, %v47
    // Predicated region
    $region22: #{_forward_jit.1} parent=1 // pred_check
      %p50 = pneg %p27
    $region23: #{_forward_jit.1} parent=1 // pred_check_branch
      %52 = sbr.rel (%p50) target = $region25
    $region24: #{_forward_jit.1} parent=1 // pred_region
      %v53 = vld [vmem:[#allocation2] sm:$0xff]
      %s54 = sld [smem:[#allocation3]]
      %v55 = vstv %s54
      %v56 = vadd.f32 %v53, %v55
      %57 = vst.msk [vmem:[%s3] sm:$0xff] %vm48, %v56
    $region25: #{_forward_jit.1} parent=1 // pred_fallthru
      _
    // Predicated region
    $region26: #{_forward_jit.1} parent=1 // pred_check
      _
    $region27: #{_forward_jit.1} parent=1 // pred_check_branch
      %59 = sbr.rel (0) target = $region29
    $region28: #{_forward_jit.1} parent=1 // pred_region
      _
    $region29: #{_forward_jit.1} parent=1 // pred_fallthru
      _
    // Predicated region
    $region30: #{_forward_jit.1} parent=1 // pred_check
      _
    $region31: #{_forward_jit.1} parent=1 // pred_check_branch
      %61 = sbr.rel (0) target = $region33
    $region32: #{_forward_jit.1} parent=1 // pred_region
      _
    $region33: #{_forward_jit.1} parent=1 // pred_fallthru
      _
    %62 = vsyncpa [#allocation5], 1

</llo_original>
